<compile_context>
chip_gen: v7x
topology: tpu7x:2x2x1
jax: 0.10.0
libtpu: 0.0.40
codegen_flags: <defaults>
</compile_context>

<pallas_src>
import functools

import jax
import jax.numpy as jnp
from jax import lax
from jax.experimental import pallas as pl
from jax.experimental.pallas import tpu as pltpu

_LANES = 128


def _stable_bce_elems(x, label_value):
    """Elementwise BCE-with-logits against a constant label (numerically stable)."""
    x = x.astype(jnp.float32)
    y = jnp.float32(label_value)
    # log(1 + exp) instead of log1p: one fewer EUP-class op per element; the |x|>16
    # rounding difference (<1e-7/elem) is negligible for a mean loss.
    return jnp.maximum(x, 0.0) - x * y + jnp.log(1.0 + jnp.exp(-jnp.abs(x)))


def _gan_loss_kernel(x_ref, out_ref, acc_ref, *, label_value, block_rows, chunk_rows,
                     fold_rows, lanes, total_tiles, tiles_per_core, rows_in_last,
                     tiles_even, bf16_softplus):
    """Sums the stable BCE loss over grid = (num_cores, tiles_per_core); tile t = c*T + j."""
    c = pl.program_id(0)
    j = pl.program_id(1)
    t = c * tiles_per_core + j
    num_chunks = block_rows // chunk_rows
    y = jnp.float32(label_value)

    @pl.when(j == 0)
    def _():
        acc_ref[...] = jnp.zeros_like(acc_ref)

    def chunk_loss(ci):
        r0 = ci * chunk_rows
        if not isinstance(r0, int):
            r0 = pl.multiple_of(r0, chunk_rows)
        x = x_ref[pl.ds(r0, chunk_rows), :].astype(jnp.float32)
        neg_abs = -jnp.abs(x)
        if bf16_softplus:
            # Optional (v6e/v7x): bf16 EUP throughput ~2x f32; changes low-order bits.
            e = jnp.exp(neg_abs.astype(jnp.bfloat16)).astype(jnp.float32)
        else:
            e = jnp.exp(neg_abs)
        return jnp.maximum(x, 0.0) - x * y + jnp.log(1.0 + e)

    def fold(v):
        # (chunk_rows, lanes) -> (fold_rows, lanes): pure VPU adds; fold_rows > 8 keeps
        # several independent vreg accumulation chains in flight.
        return v.reshape(chunk_rows // fold_rows, fold_rows, lanes).sum(axis=0)

    def reduce_tile(masked):
        def one_chunk(ci):
            loss = chunk_loss(ci)
            if masked:
                # Pallas pads OOB rows of the last block with unspecified values;
                # only the single ragged tile pays for this row mask.
                row = lax.broadcasted_iota(jnp.int32, (chunk_rows, lanes), 0)
                row = row + ci * chunk_rows
                loss = jnp.where(row < rows_in_last, loss, 0.0)
            return fold(loss)

        if num_chunks == 1:
            part = one_chunk(0)
        else:
            part = lax.fori_loop(
                0, num_chunks,
                lambda ci, p: p + one_chunk(ci),
                jnp.zeros((fold_rows, lanes), jnp.float32),
                unroll=True)
        acc_ref[...] += part

    ragged = rows_in_last != block_rows           # static Python bool

    if not ragged:
        if tiles_even:
            reduce_tile(masked=False)
        else:
            pl.when(t < total_tiles)(lambda: reduce_tile(masked=False))
    else:
        is_last = t == total_tiles - 1
        full = jnp.logical_not(is_last)
        if not tiles_even:
            full = jnp.logical_and(full, t < total_tiles)
        pl.when(full)(lambda: reduce_tile(masked=False))
        pl.when(is_last)(lambda: reduce_tile(masked=True))

    @pl.when(j == tiles_per_core - 1)
    def _():
        out_ref[...] = jnp.sum(acc_ref[...], keepdims=True)


def _detect_num_tensorcores() -> int:
    """2 only on chips with >1 TensorCore worth splitting over (v7x / megacore)."""
    try:
        dev = jax.devices()[0]
        kind = str(getattr(dev, "device_kind", "")).lower()
        if dev.platform == "tpu" and any(tag in kind for tag in ("7x", "v7", "v4", "v5p")):
            return 2
    except Exception:
        pass
    return 1   # v5e / v6e: single TensorCore -> no extra leading grid work


def gan_loss(inp, real, label_smoothing: float = 1.0, *, block_rows: int = 8192,
             num_cores=None, use_core_parallel: bool = False, bf16_softplus: bool = False):
    """JAX/Pallas equivalent of GANLoss.forward(inp, real). Returns a scalar f32."""
    label_value = float(label_smoothing) if real else float(1.0 - label_smoothing)
    n = int(inp.size)
    flat = inp.reshape(-1)

    rows = n // _LANES
    n_main = rows * _LANES

    if rows == 0:
        # Degenerate tiny input (< 128 elements): not worth a kernel launch.
        return jnp.sum(_stable_bce_elems(flat, label_value)) / jnp.float32(n)

    if n_main == n:
        # Common NCHW-discriminator case: free lane-dense reshape, zero extra copies.
        main = flat
        tail_sum = jnp.float32(0.0)
    else:
        # Ragged size: stream only the lane-aligned main slab through the kernel and
        # reduce the <128-element tail with plain jnp (no padded full-array copy and
        # no in-kernel log(2) fixup).
        main = flat[:n_main]
        tail_sum = jnp.sum(_stable_bce_elems(flat[n_main:], label_value))
    x2d = main.reshape(rows, _LANES)

    # Tile geometry: big lane-dense tiles (default 8192 rows = 4 MiB f32), reduced in
    # <=512-row sub-chunks so elementwise temporaries stay small.
    block_rows = min(int(block_rows), rows)
    if block_rows >= 512:
        block_rows = (block_rows // 512) * 512
        chunk_rows = 512
    elif block_rows >= 8:
        block_rows = (block_rows // 8) * 8
        chunk_rows = block_rows
    else:                               # rows < 8: single block equal to the full array
        block_rows = rows
        chunk_rows = rows
    if chunk_rows % 32 == 0:
        fold_rows = 32
    elif chunk_rows % 8 == 0:
        fold_rows = 8
    else:
        fold_rows = chunk_rows

    total_tiles = (rows + block_rows - 1) // block_rows
    rows_in_last = rows - (total_tiles - 1) * block_rows

    if num_cores is None:
        num_cores = _detect_num_tensorcores()
    num_cores = max(1, min(int(num_cores), total_tiles))
    tiles_per_core = (total_tiles + num_cores - 1) // num_cores
    tiles_even = tiles_per_core * num_cores == total_tiles

    if tiles_even:
        in_index_map = lambda c, j: (c * tiles_per_core + j, 0)
    else:
        last_tile = total_tiles - 1
        # Never point a DMA at a fully out-of-bounds block; the kernel gates the
        # (zero) contribution of those padded grid steps.
        in_index_map = lambda c, j: (jnp.minimum(c * tiles_per_core + j, last_tile), 0)

    kernel = functools.partial(
        _gan_loss_kernel,
        label_value=label_value, block_rows=block_rows, chunk_rows=chunk_rows,
        fold_rows=fold_rows, lanes=_LANES, total_tiles=total_tiles,
        tiles_per_core=tiles_per_core, rows_in_last=rows_in_last,
        tiles_even=tiles_even, bf16_softplus=bf16_softplus)

    cost = pl.CostEstimate(
        flops=8 * n_main,
        transcendentals=2 * n_main,                 # exp + log per element
        bytes_accessed=n_main * x2d.dtype.itemsize + num_cores * 4)

    # Review note (v7x): if xprof shows plain "parallel" keeping both leading-axis
    # steps on one TensorCore, call with use_core_parallel=True.
    axis0_sem = pltpu.CORE_PARALLEL if use_core_parallel else "parallel"

    partial_sums = pl.pallas_call(
        kernel,
        out_shape=jax.ShapeDtypeStruct((num_cores, 1), jnp.float32),
        grid_spec=pltpu.PrefetchScalarGridSpec(
            num_scalar_prefetch=0,
            grid=(num_cores, tiles_per_core),
            in_specs=[pl.BlockSpec((block_rows, _LANES), in_index_map)],
            out_specs=pl.BlockSpec((1, 1), lambda c, j: (c, 0)),
            scratch_shapes=[pltpu.VMEM((fold_rows, _LANES), jnp.float32)]),
        compiler_params=pltpu.CompilerParams(
            dimension_semantics=(axis0_sem, "arbitrary"),
            vmem_limit_bytes=32 * 1024 * 1024),     # explicit: v5e default is only 16 MiB
        cost_estimate=cost,
    )(x2d)

    total = jnp.sum(partial_sums) + tail_sum
    return total / jnp.float32(n)


def _reference_gan_loss(inp, real, label_smoothing: float = 1.0):
    y = label_smoothing if real else 1.0 - label_smoothing
    x = inp.astype(jnp.float32)
    return jnp.mean(jnp.maximum(x, 0.0) - x * y + jnp.log1p(jnp.exp(-jnp.abs(x))))


if __name__ == "__main__":
    key = jax.random.PRNGKey(0)
    k1, k2, k3, k4 = jax.random.split(key, 4)
    ls = 0.9

    # Typical NCHW discriminator logits (lane-divisible -> zero-copy reshape path).
    x1 = jax.random.normal(k1, (2, 4, 16, 16), dtype=jnp.float32)
    # Size not divisible by 128 (ragged tail in the wrapper + masked ragged tile).
    x2 = jax.random.normal(k2, (2, 3, 15, 15), dtype=jnp.float32)
    # Forces multi-tile accumulation (and an explicit 2-way core-split grid).
    x3 = jax.random.normal(k3, (2, 4, 32, 32), dtype=jnp.float32)
    # Large enough to exercise the multi-chunk (fori_loop, unroll=True) tile path.
    x4 = jax.random.normal(k4, (2, 2, 128, 256), dtype=jnp.float32)

    checks = [
        (gan_loss(x1, True, ls), _reference_gan_loss(x1, True, ls)),
        (gan_loss(x1, False, ls), _reference_gan_loss(x1, False, ls)),
        (gan_loss(x2, True, ls), _reference_gan_loss(x2, True, ls)),
        (gan_loss(x3, False, ls, block_rows=16), _reference_gan_loss(x3, False, ls)),
        (gan_loss(x3, True, ls, block_rows=24, num_cores=2), _reference_gan_loss(x3, True, ls)),
        (gan_loss(x4, True, ls), _reference_gan_loss(x4, True, ls)),
    ]
    for got, want in checks:
        got = jax.block_until_ready(got)
        want = jax.block_until_ready(want)
        assert jnp.allclose(got, want, atol=1e-5, rtol=1e-5), (got, want)

    print("KERNEL_OK")
</pallas_src>

<mosaic_0001>
module attributes {stable_mosaic.version = 11 : i64} {
  func.func @_gan_loss_kernel(%arg0: i32, %arg1: i32, %arg2: memref<16x128xf32, #tpu.memory_space<vmem>>, %arg3: memref<1x1xf32, #tpu.memory_space<vmem>>, %arg4: memref<8x128xf32, #tpu.memory_space<vmem>>) attributes {dimension_semantics = [#tpu.dimension_semantics<parallel>, #tpu.dimension_semantics<arbitrary>], iteration_bounds = array<i64: 1, 1>, scalar_prefetch = 0 : i64, scratch_operands = 1 : i64, tpu.core_type = #tpu.core_type<tc>, window_params = [{transform_indices = @transform_0, window_bounds = array<i64: 16, 128>}, {transform_indices = @transform_1, window_bounds = array<i64: 1, 1>}]} {
    %c0_i32 = arith.constant 0 : i32
    %0 = arith.cmpi eq, %arg1, %c0_i32 : i32
    %1 = arith.extui %0 : i1 to i32
    %c0_i32_0 = arith.constant 0 : i32
    %2 = arith.cmpi ne, %1, %c0_i32_0 : i32
    scf.if %2 {
      %cst_12 = arith.constant 0.000000e+00 : f32
      %25 = vector.broadcast %cst_12 : f32 to vector<8x128xf32>
      %c0_13 = arith.constant 0 : index
      %c0_14 = arith.constant 0 : index
      %26 = vector.load %arg4[%c0_13, %c0_14] : memref<8x128xf32, #tpu.memory_space<vmem>>, vector<8x128xf32>
      tpu.vector_store %arg4[%c0_13, %c0_14], %25 {strides = array<i32>} : memref<8x128xf32, #tpu.memory_space<vmem>>, vector<8x128xf32>,
    } else {
    }
    %c0 = arith.constant 0 : index
    %c0_1 = arith.constant 0 : index
    %3 = vector.load %arg2[%c0, %c0_1] : memref<16x128xf32, #tpu.memory_space<vmem>>, vector<16x128xf32>
    %4 = math.absf %3 : vector<16x128xf32>
    %cst = arith.constant 0.000000e+00 : f32
    %5 = vector.broadcast %cst : f32 to vector<16x128xf32>
    %6 = arith.subf %5, %4 : vector<16x128xf32>
    %7 = math.exp %6 : vector<16x128xf32>
    %cst_2 = arith.constant 0.000000e+00 : f32
    %8 = vector.broadcast %cst_2 : f32 to vector<16x128xf32>
    %9 = arith.maximumf %3, %8 : vector<16x128xf32>
    %cst_3 = arith.constant 0.899999976 : f32
    %10 = vector.broadcast %cst_3 : f32 to vector<16x128xf32>
    %11 = arith.mulf %3, %10 : vector<16x128xf32>
    %12 = arith.subf %9, %11 : vector<16x128xf32>
    %cst_4 = arith.constant 1.000000e+00 : f32
    %13 = vector.broadcast %cst_4 : f32 to vector<16x128xf32>
    %14 = arith.addf %13, %7 : vector<16x128xf32>
    %15 = math.log %14 : vector<16x128xf32>
    %16 = arith.addf %12, %15 : vector<16x128xf32>
    %17 = vector.shape_cast %16 : vector<16x128xf32> to vector<2x8x128xf32>
    %cst_5 = arith.constant dense<0.000000e+00> : vector<8x128xf32>
    %18 = vector.multi_reduction <add>, %17, %cst_5 [0] : vector<2x8x128xf32> to vector<8x128xf32>
    %c0_6 = arith.constant 0 : index
    %c0_7 = arith.constant 0 : index
    %19 = vector.load %arg4[%c0_6, %c0_7] : memref<8x128xf32, #tpu.memory_space<vmem>>, vector<8x128xf32>
    %20 = arith.addf %19, %18 : vector<8x128xf32>
    %c0_8 = arith.constant 0 : index
    %c0_9 = arith.constant 0 : index
    %21 = vector.load %arg4[%c0_8, %c0_9] : memref<8x128xf32, #tpu.memory_space<vmem>>, vector<8x128xf32>
    tpu.vector_store %arg4[%c0_8, %c0_9], %20 {strides = array<i32>} : memref<8x128xf32, #tpu.memory_space<vmem>>, vector<8x128xf32>,
    %c0_i32_10 = arith.constant 0 : i32
    %22 = arith.cmpi eq, %arg1, %c0_i32_10 : i32
    %23 = arith.extui %22 : i1 to i32
    %c0_i32_11 = arith.constant 0 : i32
    %24 = arith.cmpi ne, %23, %c0_i32_11 : i32
    scf.if %24 {
      %c0_12 = arith.constant 0 : index
      %c0_13 = arith.constant 0 : index
      %25 = vector.load %arg4[%c0_12, %c0_13] : memref<8x128xf32, #tpu.memory_space<vmem>>, vector<8x128xf32>
      %26 = vector.shape_cast %25 : vector<8x128xf32> to vector<1x8x128xf32>
      %cst_14 = arith.constant dense<0.000000e+00> : vector<1xf32>
      %27 = vector.multi_reduction <add>, %26, %cst_14 [1, 2] : vector<1x8x128xf32> to vector<1xf32>
      %28 = vector.shape_cast %27 : vector<1xf32> to vector<1x1x1xf32>
      %29 = vector.extract %28[0, 0, 0] : f32 from vector<1x1x1xf32>
      %30 = vector.broadcast %29 : f32 to vector<1x1xf32>
      %c0_15 = arith.constant 0 : index
      %c0_16 = arith.constant 0 : index
      %31 = vector.load %arg3[%c0_15, %c0_16] : memref<1x1xf32, #tpu.memory_space<vmem>>, vector<1x1xf32>
      tpu.vector_store %arg3[%c0_15, %c0_16], %30 {strides = array<i32>} : memref<1x1xf32, #tpu.memory_space<vmem>>, vector<1x1xf32>,
    } else {
    }
    return
  }
  func.func @transform_0(%arg0: i32, %arg1: i32) -> (i32, i32) {
    %c1_i32 = arith.constant 1 : i32
    %0 = arith.muli %arg0, %c1_i32 : i32
    %1 = arith.addi %0, %arg1 : i32
    %c0_i32 = arith.constant 0 : i32
    %c0_i32_0 = arith.constant 0 : i32
    return %1, %c0_i32 : i32, i32
  }
  func.func @transform_1(%arg0: i32, %arg1: i32) -> (i32, i32) {
    %c0_i32 = arith.constant 0 : i32
    %c0_i32_0 = arith.constant 0 : i32
    return %arg0, %c0_i32 : i32, i32
  }
}

</mosaic_0001>

<llo_original>
// kernel: tpu_custom_call.1
$region0: #{tpu_custom_call.1}
  #allocation0 [shape = 'u32[]', space=smem, size = 0x4, offset = 0x4, fixed_abs, tag = 'smem constant byte address 0x4 - core index']
  #allocation1 [shape = 'u32[144,128]{1,0:T(1,128)}', space=vmem, size = 0x12000, scoped, tag = 'internal scratch']
  #allocation2 [shape = 'f32[8,128]{1,0:T(8,128)}', space=vmem, size = 0x1000, scoped, tag = 'scratch operand']
  %s0 = inlined_call_operand.hbm [shape: f32[16,128], index: 0, kind: input, shape index: {}]
  %s1 = inlined_call_operand.hbm [shape: f32[1,1], index: 1, kind: output, shape index: {}]
  %s2 = sld [smem:[#allocation0]]
  $region26: #{tpu_custom_call.1} parent=0
    _
  %s4 = ssub.s32 1, %s2
  %s5 = scalar_select 0, %s4, %s2
  $region1: #{tpu_custom_call.1} parent=0
    #allocation3 [shape = 'u8[8192]{0}', space=vmem, size = 0x2000, scoped, tag = 'input window, operand 0, single buffered']
    #allocation4 [shape = 's32[1]{0}', space=sflag, size = 0x4, scoped, tag = 'scoped memory for tpu_custom_call.1']
    #allocation5 [shape = 's32[1]{0}', space=sflag, size = 0x4, scoped, tag = 'scoped memory for tpu_custom_call.1']
    #allocation6 [shape = 'u8[512]{0}', space=vmem, size = 0x400, scoped, tag = 'output window, operand 0, single buffered']
    %6 = vsyncpa [#allocation4], 0
    %7 = vsyncpa [#allocation5], 0
    // Predicated region
    $region2: #{tpu_custom_call.1} parent=1 // pred_check
      _
    $region3: #{tpu_custom_call.1} parent=1 // pred_check_branch
      %9 = sbr.rel (0) target = $region5
    $region4: #{tpu_custom_call.1} parent=1 // pred_region
      %s10 = sadd.s32 0, 0
      %s11 = smul.u32 2, %s10
      %s13 = ssub.s32 256, 256
      %14 = vsyncadd [#allocation4], %s13
      %s15 = smul.addr %s11, 128
      %s16 = scalar_lea.hbm %s0, %s15
      %s17 = sshll.u32 [#allocation3], 4
      %s18 = int_to_ptr.vmem [resolvable:$true] %s17
      %23 = dma.hbm_to_vmem [thread:$0]  %s16, 256, %s18, [#allocation4], 128, 128, 8
    $region5: #{tpu_custom_call.1} parent=1 // pred_fallthru
      _
    // Predicated region
    $region6: #{tpu_custom_call.1} parent=1 // pred_check
      _
    $region7: #{tpu_custom_call.1} parent=1 // pred_check_branch
      %25 = sbr.rel (0) target = $region9
    $region8: #{tpu_custom_call.1} parent=1 // pred_region
      %26 = dma.done [#allocation4], 256
    $region9: #{tpu_custom_call.1} parent=1 // pred_fallthru
      _
    %s27 = sadd.s32 0, 0
    %s28 = smul.u32 2, %s27
    %p29 = scmp.eq.s32.totalorder 0, 0
    // Predicated region
    $region10: #{tpu_custom_call.1} parent=1 // pred_check
      %p30 = pneg %p29
    $region11: #{tpu_custom_call.1} parent=1 // pred_check_branch
      %32 = sbr.rel (%p30) target = $region13
    $region12: #{tpu_custom_call.1} parent=1 // pred_region
      %33 = vst [vmem:[#allocation2] sm:$0xff] 0.0
    $region13: #{tpu_custom_call.1} parent=1 // pred_fallthru
      _
    %v34 = vld [vmem:[#allocation3] sm:$0xff]
    %v35 = vld [vmem:[#allocation3 + $0x8] sm:$0xff]
    %v36 = vand.u32 2147483647, %v34
    %v37 = vand.u32 2147483647, %v35
    %v38 = vsub.f32 0.0, %v36
    %v39 = vsub.f32 0.0, %v37
    %v40 = vmul.f32 %v38, 1.442695
    %v41 = vpow.pop %v40
    %v42 = vmul.f32 %v39, 1.442695
    %v43 = vpow.pop %v42
    %v44 = vmax.f32 %v34, 0.0
    %v45 = vmax.f32 %v35, 0.0
    %v46 = vmul.f32 %v34, 0.9
    %v47 = vmul.f32 %v35, 0.9
    %v48 = vsub.f32 %v44, %v46
    %v49 = vsub.f32 %v45, %v47
    %v50 = vadd.f32 %v41, 1.0
    %v51 = vadd.f32 %v43, 1.0
    %v52 = vlog2.pop %v50
    %v53 = vmul.f32 %v52, 0.6931472
    %v54 = vlog2.pop %v51
    %v55 = vmul.f32 %v54, 0.6931472
    %v56 = vadd.f32 %v48, %v53
    %v57 = vadd.f32 %v49, %v55
    %v58 = vadd.f32 %v56, %v57
    %v59 = vld [vmem:[#allocation2] sm:$0xff]
    %v60 = vadd.f32 %v59, %v58
    %61 = vst [vmem:[#allocation2] sm:$0xff] %v60
    // Predicated region
    $region14: #{tpu_custom_call.1} parent=1 // pred_check
      %p62 = pneg %p29
    $region15: #{tpu_custom_call.1} parent=1 // pred_check_branch
      %64 = sbr.rel (%p62) target = $region17
    $region16: #{tpu_custom_call.1} parent=1 // pred_region
      %v65 = vld [vmem:[#allocation2] sm:$0xff]
      %66 = vadd.xlane.f32.xlu0 %v65
      %v67 = vpop.xlane.xlu0 %66
      %v68 = vrot.slane %v67, 4
      %v69 = vadd.f32 %v67, %v68
      %v70 = vrot.slane %v69, 2
      %v71 = vadd.f32 %v69, %v70
      %v72 = vrot.slane %v71, 1
      %v73 = vadd.f32 %v71, %v72
      %s74 = vtos %v73
      %v75 = vstv %s74
      %vm76 = vcmask 0
      %77 = vst.msk [vmem:[#allocation6] sm:$0x1] %vm76, %v75
    $region17: #{tpu_custom_call.1} parent=1 // pred_fallthru
      _
    // Predicated region
    $region18: #{tpu_custom_call.1} parent=1 // pred_check
      _
    $region19: #{tpu_custom_call.1} parent=1 // pred_check_branch
      %79 = sbr.rel (0) target = $region21
    $region20: #{tpu_custom_call.1} parent=1 // pred_region
      %s81 = ssub.s32 16, 16
      %82 = vsyncadd [#allocation5], %s81
      %s84 = sshll.u32 [#allocation6], 4
      %s85 = int_to_ptr.vmem [resolvable:$true] %s84
      %87 = dma.vmem_to_hbm [thread:$0]  %s85, 16, %s1, [#allocation5]
    $region21: #{tpu_custom_call.1} parent=1 // pred_fallthru
      _
    // Predicated region
    $region22: #{tpu_custom_call.1} parent=1 // pred_check
      _
    $region23: #{tpu_custom_call.1} parent=1 // pred_check_branch
      %89 = sbr.rel (0) target = $region25
    $region24: #{tpu_custom_call.1} parent=1 // pred_region
      %90 = dma.done [#allocation5], 16
    $region25: #{tpu_custom_call.1} parent=1 // pred_fallthru
      _
    %91 = vsyncpa [#allocation4], 1
    %92 = vsyncpa [#allocation5], 1

</llo_original>
